<compile_context>
chip_gen: v6e
topology: v6e:2x2x1
jax: 0.10.0
libtpu: 0.0.40
codegen_flags: <defaults>
</compile_context>

<pallas_src>
import functools

import jax
import jax.numpy as jnp
from jax.experimental import pallas as pl
from jax.experimental.pallas import tpu as pltpu


def _mlm_head_kernel(x_ref, w_ref, b_ref, gamma_ref, beta_ref, o_ref, *, eps):
    # x_ref: (tm, H), w_ref: (H, E), b/gamma/beta: (1, E), o_ref: (tm, E)

    # Dense layer on the MXU in the native input dtype; accumulate in f32.
    h = jnp.dot(x_ref[...], w_ref[...], preferred_element_type=jnp.float32)
    h = h + b_ref[...].astype(jnp.float32)

    # Exact GELU (erf form) == torch GELU default (approximate='none').
    inv_sqrt2 = jnp.float32(0.7071067811865476)
    h = jnp.float32(0.5) * h * (jnp.float32(1.0) + jax.lax.erf(h * inv_sqrt2))

    # LayerNorm over the last (embedding) dim, biased variance like nn.LayerNorm.
    # Fused statistics: mean and mean-of-squares (2 cross-lane reductions).
    mean = jnp.mean(h, axis=-1, keepdims=True)
    mean_sq = jnp.mean(h * h, axis=-1, keepdims=True)
    var = jnp.maximum(mean_sq - mean * mean, jnp.float32(0.0))
    inv = jax.lax.rsqrt(var + jnp.float32(eps))

    y = (h - mean) * inv
    y = y * gamma_ref[...].astype(jnp.float32) + beta_ref[...].astype(jnp.float32)
    o_ref[...] = y.astype(o_ref.dtype)


def _round_up(x, m):
    return -(-x // m) * m


def _choose_tm(M, H, E, in_itemsize, out_itemsize, tm_max=512, budget=20 << 20):
    """Largest row tile (multiple of 8) whose pipelined buffers fit the budget."""
    # double-buffered x tile + double-buffered out tile + ~4 f32 temps per row
    per_row = 2 * H * in_itemsize + 2 * E * out_itemsize + 4 * E * 4
    avail = max(budget, 8 * per_row)
    tm = min(tm_max, avail // per_row)
    tm = max(8, (tm // 8) * 8)
    tm = min(tm, _round_up(M, 8))          # don't over-tile tiny inputs
    return int(tm)


def _make_call(M, H, E, out_dtype, tm, eps, cost, single_buffer_consts):
    """Build the pallas_call; optionally single-buffer grid-constant operands."""
    const_kw = {"pipeline_mode": pl.Buffered(1)} if single_buffer_consts else {}
    kernel = functools.partial(_mlm_head_kernel, eps=eps)
    return pl.pallas_call(
        kernel,
        out_shape=jax.ShapeDtypeStruct((M, E), out_dtype),
        grid_spec=pltpu.PrefetchScalarGridSpec(
            num_scalar_prefetch=0,
            grid=(pl.cdiv(M, tm),),
            in_specs=[
                # streaming row tile of activations (default double-buffered)
                pl.BlockSpec((tm, H), lambda i: (i, 0)),
                # grid-constant operands: dense W, dense bias, LN weight, LN bias
                pl.BlockSpec((H, E), lambda i: (0, 0), **const_kw),
                pl.BlockSpec((1, E), lambda i: (0, 0), **const_kw),
                pl.BlockSpec((1, E), lambda i: (0, 0), **const_kw),
                pl.BlockSpec((1, E), lambda i: (0, 0), **const_kw),
            ],
            out_specs=pl.BlockSpec((tm, E), lambda i: (i, 0)),
        ),
        compiler_params=pltpu.CompilerParams(
            dimension_semantics=("parallel",),   # rows shard across TCs (megacore)
            vmem_limit_bytes=48 << 20,           # headroom; < 64 MiB v7x physical
        ),
        cost_estimate=cost,
    )


def bert_mlm_head_transform(x, w, b, gamma, beta, *, eps=1e-5, tm=None):
    """x: (B, S, H) -> (B, S, E). w: (H, E); b, gamma, beta: (E,)."""
    B, S, H = x.shape
    E = w.shape[1]
    M = B * S

    in_itemsize = jnp.dtype(x.dtype).itemsize
    out_itemsize = in_itemsize
    if tm is None:
        tm_eff = _choose_tm(M, H, E, in_itemsize, out_itemsize)
    else:
        tm_eff = min(int(tm), _round_up(M, 8))
        tm_eff = max(8, (tm_eff // 8) * 8)

    x2d = x.reshape(M, H)
    b2d = b.reshape(1, E)
    g2d = gamma.reshape(1, E)
    beta2d = beta.reshape(1, E)

    cost = pl.CostEstimate(
        flops=2 * M * H * E + 8 * M * E,
        transcendentals=M * E,  # erf per output element
        bytes_accessed=(M * H + H * E + M * E) * in_itemsize + 3 * E * 4,
    )

    try:
        out2d = _make_call(M, H, E, x.dtype, tm_eff, eps, cost, True)(
            x2d, w, b2d, g2d, beta2d
        )
        out2d = jax.block_until_ready(out2d)
    except Exception:
        # Fallback: identical kernel without the single-buffering hint.
        out2d = _make_call(M, H, E, x.dtype, tm_eff, eps, cost, False)(
            x2d, w, b2d, g2d, beta2d
        )

    return out2d.reshape(B, S, E)


def _reference(x, w, b, gamma, beta, eps=1e-5):
    h = jnp.einsum("bsh,he->bse", x.astype(jnp.float32), w.astype(jnp.float32)) + b
    h = 0.5 * h * (1.0 + jax.lax.erf(h / jnp.sqrt(2.0)))
    mean = jnp.mean(h, axis=-1, keepdims=True)
    var = jnp.mean((h - mean) ** 2, axis=-1, keepdims=True)
    return ((h - mean) * jax.lax.rsqrt(var + eps)) * gamma + beta


if __name__ == "__main__":
    # Small shapes consistent with the module. S=9 makes M=18 (not a multiple
    # of 8/tm) so the ragged-tail (masked last block) path is exercised.
    B, S, H, E = 2, 9, 128, 256
    key = jax.random.PRNGKey(0)
    kx, kw, kb, kg, kbe = jax.random.split(key, 5)

    x = jax.random.normal(kx, (B, S, H), dtype=jnp.float32)

    # Deterministic xavier_uniform init for the dense kernel (hidden -> embedding)
    limit = float((6.0 / (H + E)) ** 0.5)
    w = jax.random.uniform(kw, (H, E), dtype=jnp.float32, minval=-limit, maxval=limit)
    # Non-trivial bias / LN affine so those paths are actually checked.
    b = 0.1 * jax.random.normal(kb, (E,), dtype=jnp.float32)
    gamma = 1.0 + 0.1 * jax.random.normal(kg, (E,), dtype=jnp.float32)
    beta = 0.1 * jax.random.normal(kbe, (E,), dtype=jnp.float32)

    ref = _reference(x, w, b, gamma, beta, eps=1e-5)

    # Default (adaptive large-tile) path: single grid step, ragged rows masked.
    out = bert_mlm_head_transform(x, w, b, gamma, beta, eps=1e-5)
    out = jax.block_until_ready(out)
    assert out.shape == (B, S, E)
    assert jnp.allclose(out, ref.astype(out.dtype), atol=5e-4, rtol=5e-4)

    # Small explicit tile -> multi-step grid + masked ragged last block.
    out2 = bert_mlm_head_transform(x, w, b, gamma, beta, eps=1e-5, tm=16)
    out2 = jax.block_until_ready(out2)
    assert jnp.allclose(out2, ref.astype(out2.dtype), atol=5e-4, rtol=5e-4)

    print("KERNEL_OK")
</pallas_src>

<mosaic_0001>
module attributes {stable_mosaic.version = 11 : i64} {
  func.func @_mlm_head_kernel(%arg0: i32, %arg1: memref<24x128xf32, #tpu.memory_space<vmem>>, %arg2: memref<128x256xf32, #tpu.memory_space<vmem>>, %arg3: memref<1x256xf32, #tpu.memory_space<vmem>>, %arg4: memref<1x256xf32, #tpu.memory_space<vmem>>, %arg5: memref<1x256xf32, #tpu.memory_space<vmem>>, %arg6: memref<24x256xf32, #tpu.memory_space<vmem>>) attributes {dimension_semantics = [#tpu.dimension_semantics<parallel>], iteration_bounds = array<i64: 1>, scalar_prefetch = 0 : i64, scratch_operands = 0 : i64, tpu.core_type = #tpu.core_type<tc>, window_params = [{transform_indices = @transform_0, window_bounds = array<i64: 24, 128>}, {pipeline_mode = #tpu.pipeline_mode<synchronous>, transform_indices = @transform_1, window_bounds = array<i64: 128, 256>}, {pipeline_mode = #tpu.pipeline_mode<synchronous>, transform_indices = @transform_2, window_bounds = array<i64: 1, 256>}, {pipeline_mode = #tpu.pipeline_mode<synchronous>, transform_indices = @transform_3, window_bounds = array<i64: 1, 256>}, {pipeline_mode = #tpu.pipeline_mode<synchronous>, transform_indices = @transform_4, window_bounds = array<i64: 1, 256>}, {transform_indices = @transform_5, window_bounds = array<i64: 24, 256>}]} {
    %c0 = arith.constant 0 : index
    %c0_0 = arith.constant 0 : index
    %0 = vector.load %arg1[%c0, %c0_0] : memref<24x128xf32, #tpu.memory_space<vmem>>, vector<24x128xf32>
    %c0_1 = arith.constant 0 : index
    %c0_2 = arith.constant 0 : index
    %1 = vector.load %arg2[%c0_1, %c0_2] : memref<128x256xf32, #tpu.memory_space<vmem>>, vector<128x256xf32>
    %cst = arith.constant dense<0.000000e+00> : vector<24x256xf32>
    %2 = tpu.matmul %0, %1, %cst {dimension_numbers = #tpu.dot_dimension_numbers<[1], [0], [0], [1], [0, 0, 1, 1], [], []>} : vector<24x128xf32>, vector<128x256xf32>, vector<24x256xf32> -> vector<24x256xf32>
    %c0_3 = arith.constant 0 : index
    %c0_4 = arith.constant 0 : index
    %3 = vector.load %arg3[%c0_3, %c0_4] : memref<1x256xf32, #tpu.memory_space<vmem>>, vector<1x256xf32>
    %4 = vector.broadcast %3 : vector<1x256xf32> to vector<24x256xf32>
    %5 = arith.addf %2, %4 : vector<24x256xf32>
    %cst_5 = arith.constant 5.000000e-01 : f32
    %6 = vector.broadcast %cst_5 : f32 to vector<24x256xf32>
    %7 = arith.mulf %6, %5 : vector<24x256xf32>
    %cst_6 = arith.constant 0.707106769 : f32
    %8 = vector.broadcast %cst_6 : f32 to vector<24x256xf32>
    %9 = arith.mulf %5, %8 : vector<24x256xf32>
    %10 = math.erf %9 : vector<24x256xf32>
    %cst_7 = arith.constant 1.000000e+00 : f32
    %11 = vector.broadcast %cst_7 : f32 to vector<24x256xf32>
    %12 = arith.addf %11, %10 : vector<24x256xf32>
    %13 = arith.mulf %7, %12 : vector<24x256xf32>
    %cst_8 = arith.constant dense<0.000000e+00> : vector<24xf32>
    %14 = vector.multi_reduction <add>, %13, %cst_8 [1] : vector<24x256xf32> to vector<24xf32>
    %15 = vector.shape_cast %14 : vector<24xf32> to vector<24x1xf32>
    %cst_9 = arith.constant 2.560000e+02 : f32
    %16 = vector.broadcast %cst_9 : f32 to vector<24x1xf32>
    %17 = arith.divf %15, %16 : vector<24x1xf32>
    %18 = arith.mulf %13, %13 : vector<24x256xf32>
    %cst_10 = arith.constant dense<0.000000e+00> : vector<24xf32>
    %19 = vector.multi_reduction <add>, %18, %cst_10 [1] : vector<24x256xf32> to vector<24xf32>
    %20 = vector.shape_cast %19 : vector<24xf32> to vector<24x1xf32>
    %cst_11 = arith.constant 2.560000e+02 : f32
    %21 = vector.broadcast %cst_11 : f32 to vector<24x1xf32>
    %22 = arith.divf %20, %21 : vector<24x1xf32>
    %23 = arith.mulf %17, %17 : vector<24x1xf32>
    %24 = arith.subf %22, %23 : vector<24x1xf32>
    %cst_12 = arith.constant 0.000000e+00 : f32
    %25 = vector.broadcast %cst_12 : f32 to vector<24x1xf32>
    %26 = arith.maximumf %24, %25 : vector<24x1xf32>
    %cst_13 = arith.constant 9.99999974E-6 : f32
    %27 = vector.broadcast %cst_13 : f32 to vector<24x1xf32>
    %28 = arith.addf %26, %27 : vector<24x1xf32>
    %29 = math.rsqrt %28 : vector<24x1xf32>
    %30 = vector.broadcast %17 : vector<24x1xf32> to vector<24x256xf32>
    %31 = arith.subf %13, %30 : vector<24x256xf32>
    %32 = vector.broadcast %29 : vector<24x1xf32> to vector<24x256xf32>
    %33 = arith.mulf %31, %32 : vector<24x256xf32>
    %c0_14 = arith.constant 0 : index
    %c0_15 = arith.constant 0 : index
    %34 = vector.load %arg4[%c0_14, %c0_15] : memref<1x256xf32, #tpu.memory_space<vmem>>, vector<1x256xf32>
    %35 = vector.broadcast %34 : vector<1x256xf32> to vector<24x256xf32>
    %36 = arith.mulf %33, %35 : vector<24x256xf32>
    %c0_16 = arith.constant 0 : index
    %c0_17 = arith.constant 0 : index
    %37 = vector.load %arg5[%c0_16, %c0_17] : memref<1x256xf32, #tpu.memory_space<vmem>>, vector<1x256xf32>
    %38 = vector.broadcast %37 : vector<1x256xf32> to vector<24x256xf32>
    %39 = arith.addf %36, %38 : vector<24x256xf32>
    %c0_18 = arith.constant 0 : index
    %c0_19 = arith.constant 0 : index
    %40 = vector.load %arg6[%c0_18, %c0_19] : memref<24x256xf32, #tpu.memory_space<vmem>>, vector<24x256xf32>
    tpu.vector_store %arg6[%c0_18, %c0_19], %39 {strides = array<i32>} : memref<24x256xf32, #tpu.memory_space<vmem>>, vector<24x256xf32>,
    return
  }
  func.func @transform_0(%arg0: i32) -> (i32, i32) {
    %c0_i32 = arith.constant 0 : i32
    %c0_i32_0 = arith.constant 0 : i32
    return %arg0, %c0_i32 : i32, i32
  }
  func.func @transform_1(%arg0: i32) -> (i32, i32) {
    %c0_i32 = arith.constant 0 : i32
    %c0_i32_0 = arith.constant 0 : i32
    %c0_i32_1 = arith.constant 0 : i32
    return %c0_i32, %c0_i32_0 : i32, i32
  }
  func.func @transform_2(%arg0: i32) -> (i32, i32) {
    %c0_i32 = arith.constant 0 : i32
    %c0_i32_0 = arith.constant 0 : i32
    %c0_i32_1 = arith.constant 0 : i32
    return %c0_i32, %c0_i32_0 : i32, i32
  }
  func.func @transform_3(%arg0: i32) -> (i32, i32) {
    %c0_i32 = arith.constant 0 : i32
    %c0_i32_0 = arith.constant 0 : i32
    %c0_i32_1 = arith.constant 0 : i32
    return %c0_i32, %c0_i32_0 : i32, i32
  }
  func.func @transform_4(%arg0: i32) -> (i32, i32) {
    %c0_i32 = arith.constant 0 : i32
    %c0_i32_0 = arith.constant 0 : i32
    %c0_i32_1 = arith.constant 0 : i32
    return %c0_i32, %c0_i32_0 : i32, i32
  }
  func.func @transform_5(%arg0: i32) -> (i32, i32) {
    %c0_i32 = arith.constant 0 : i32
    %c0_i32_0 = arith.constant 0 : i32
    return %arg0, %c0_i32 : i32, i32
  }
}

module attributes {stable_mosaic.version = 11 : i64} {
  func.func @_mlm_head_kernel(%arg0: i32, %arg1: memref<24x128xf32, #tpu.memory_space<vmem>>, %arg2: memref<128x256xf32, #tpu.memory_space<vmem>>, %arg3: memref<1x256xf32, #tpu.memory_space<vmem>>, %arg4: memref<1x256xf32, #tpu.memory_space<vmem>>, %arg5: memref<1x256xf32, #tpu.memory_space<vmem>>, %arg6: memref<24x256xf32, #tpu.memory_space<vmem>>) attributes {dimension_semantics = [#tpu.dimension_semantics<parallel>], iteration_bounds = array<i64: 1>, scalar_prefetch = 0 : i64, scratch_operands = 0 : i64, tpu.core_type = #tpu.core_type<tc>, window_params = [{transform_indices = @transform_0, window_bounds = array<i64: 24, 128>}, {pipeline_mode = #tpu.pipeline_mode<synchronous>, transform_indices = @transform_1, window_bounds = array<i64: 128, 256>}, {pipeline_mode = #tpu.pipeline_mode<synchronous>, transform_indices = @transform_2, window_bounds = array<i64: 1, 256>}, {pipeline_mode = #tpu.pipeline_mode<synchronous>, transform_indices = @transform_3, window_bounds = array<i64: 1, 256>}, {pipeline_mode = #tpu.pipeline_mode<synchronous>, transform_indices = @transform_4, window_bounds = array<i64: 1, 256>}, {transform_indices = @transform_5, window_bounds = array<i64: 24, 256>}]} {
    %c0 = arith.constant 0 : index
    %c0_0 = arith.constant 0 : index
    %0 = vector.load %arg1[%c0, %c0_0] : memref<24x128xf32, #tpu.memory_space<vmem>>, vector<24x128xf32>
    %c0_1 = arith.constant 0 : index
    %c0_2 = arith.constant 0 : index
    %1 = vector.load %arg2[%c0_1, %c0_2] : memref<128x256xf32, #tpu.memory_space<vmem>>, vector<128x256xf32>
    %cst = arith.constant dense<0.000000e+00> : vector<24x256xf32>
    %2 = tpu.matmul %0, %1, %cst {dimension_numbers = #tpu.dot_dimension_numbers<[1], [0], [0], [1], [0, 0, 1, 1], [], []>} : vector<24x128xf32>, vector<128x256xf32>, vector<24x256xf32> -> vector<24x256xf32>
    %c0_3 = arith.constant 0 : index
    %c0_4 = arith.constant 0 : index
    %3 = vector.load %arg3[%c0_3, %c0_4] : memref<1x256xf32, #tpu.memory_space<vmem>>, vector<1x256xf32>
    %4 = vector.broadcast %3 : vector<1x256xf32> to vector<24x256xf32>
    %5 = arith.addf %2, %4 : vector<24x256xf32>
    %cst_5 = arith.constant 5.000000e-01 : f32
    %6 = vector.broadcast %cst_5 : f32 to vector<24x256xf32>
    %7 = arith.mulf %6, %5 : vector<24x256xf32>
    %cst_6 = arith.constant 0.707106769 : f32
    %8 = vector.broadcast %cst_6 : f32 to vector<24x256xf32>
    %9 = arith.mulf %5, %8 : vector<24x256xf32>
    %10 = math.erf %9 : vector<24x256xf32>
    %cst_7 = arith.constant 1.000000e+00 : f32
    %11 = vector.broadcast %cst_7 : f32 to vector<24x256xf32>
    %12 = arith.addf %11, %10 : vector<24x256xf32>
    %13 = arith.mulf %7, %12 : vector<24x256xf32>
    %cst_8 = arith.constant dense<0.000000e+00> : vector<24xf32>
    %14 = vector.multi_reduction <add>, %13, %cst_8 [1] : vector<24x256xf32> to vector<24xf32>
    %15 = vector.shape_cast %14 : vector<24xf32> to vector<24x1xf32>
    %cst_9 = arith.constant 2.560000e+02 : f32
    %16 = vector.broadcast %cst_9 : f32 to vector<24x1xf32>
    %17 = arith.divf %15, %16 : vector<24x1xf32>
    %18 = arith.mulf %13, %13 : vector<24x256xf32>
    %cst_10 = arith.constant dense<0.000000e+00> : vector<24xf32>
    %19 = vector.multi_reduction <add>, %18, %cst_10 [1] : vector<24x256xf32> to vector<24xf32>
    %20 = vector.shape_cast %19 : vector<24xf32> to vector<24x1xf32>
    %cst_11 = arith.constant 2.560000e+02 : f32
    %21 = vector.broadcast %cst_11 : f32 to vector<24x1xf32>
    %22 = arith.divf %20, %21 : vector<24x1xf32>
    %23 = arith.mulf %17, %17 : vector<24x1xf32>
    %24 = arith.subf %22, %23 : vector<24x1xf32>
    %cst_12 = arith.constant 0.000000e+00 : f32
    %25 = vector.broadcast %cst_12 : f32 to vector<24x1xf32>
    %26 = arith.maximumf %24, %25 : vector<24x1xf32>
    %cst_13 = arith.constant 9.99999974E-6 : f32
    %27 = vector.broadcast %cst_13 : f32 to vector<24x1xf32>
    %28 = arith.addf %26, %27 : vector<24x1xf32>
    %29 = math.rsqrt %28 : vector<24x1xf32>
    %30 = vector.broadcast %17 : vector<24x1xf32> to vector<24x256xf32>
    %31 = arith.subf %13, %30 : vector<24x256xf32>
    %32 = vector.broadcast %29 : vector<24x1xf32> to vector<24x256xf32>
    %33 = arith.mulf %31, %32 : vector<24x256xf32>
    %c0_14 = arith.constant 0 : index
    %c0_15 = arith.constant 0 : index
    %34 = vector.load %arg4[%c0_14, %c0_15] : memref<1x256xf32, #tpu.memory_space<vmem>>, vector<1x256xf32>
    %35 = vector.broadcast %34 : vector<1x256xf32> to vector<24x256xf32>
    %36 = arith.mulf %33, %35 : vector<24x256xf32>
    %c0_16 = arith.constant 0 : index
    %c0_17 = arith.constant 0 : index
    %37 = vector.load %arg5[%c0_16, %c0_17] : memref<1x256xf32, #tpu.memory_space<vmem>>, vector<1x256xf32>
    %38 = vector.broadcast %37 : vector<1x256xf32> to vector<24x256xf32>
    %39 = arith.addf %36, %38 : vector<24x256xf32>
    %c0_18 = arith.constant 0 : index
    %c0_19 = arith.constant 0 : index
    %40 = vector.load %arg6[%c0_18, %c0_19] : memref<24x256xf32, #tpu.memory_space<vmem>>, vector<24x256xf32>
    tpu.vector_store %arg6[%c0_18, %c0_19], %39 {strides = array<i32>} : memref<24x256xf32, #tpu.memory_space<vmem>>, vector<24x256xf32>,
    return
  }
  func.func @transform_0(%arg0: i32) -> (i32, i32) {
    %c0_i32 = arith.constant 0 : i32
    %c0_i32_0 = arith.constant 0 : i32
    return %arg0, %c0_i32 : i32, i32
  }
  func.func @transform_1(%arg0: i32) -> (i32, i32) {
    %c0_i32 = arith.constant 0 : i32
    %c0_i32_0 = arith.constant 0 : i32
    %c0_i32_1 = arith.constant 0 : i32
    return %c0_i32, %c0_i32_0 : i32, i32
  }
  func.func @transform_2(%arg0: i32) -> (i32, i32) {
    %c0_i32 = arith.constant 0 : i32
    %c0_i32_0 = arith.constant 0 : i32
    %c0_i32_1 = arith.constant 0 : i32
    return %c0_i32, %c0_i32_0 : i32, i32
  }
  func.func @transform_3(%arg0: i32) -> (i32, i32) {
    %c0_i32 = arith.constant 0 : i32
    %c0_i32_0 = arith.constant 0 : i32
    %c0_i32_1 = arith.constant 0 : i32
    return %c0_i32, %c0_i32_0 : i32, i32
  }
  func.func @transform_4(%arg0: i32) -> (i32, i32) {
    %c0_i32 = arith.constant 0 : i32
    %c0_i32_0 = arith.constant 0 : i32
    %c0_i32_1 = arith.constant 0 : i32
    return %c0_i32, %c0_i32_0 : i32, i32
  }
  func.func @transform_5(%arg0: i32) -> (i32, i32) {
    %c0_i32 = arith.constant 0 : i32
    %c0_i32_0 = arith.constant 0 : i32
    return %arg0, %c0_i32 : i32, i32
  }
}

</mosaic_0001>

<llo_original>
// kernel: tpu_custom_call.1
$region0: #{tpu_custom_call.1}
  #allocation0 [shape = 'u32[]', space=smem, size = 0x4, offset = 0x4, fixed_abs, tag = 'smem constant byte address 0x4 - core index']
  #allocation1 [shape = 'u32[144,128]{1,0:T(1,128)}', space=vmem, size = 0x12000, scoped, tag = 'internal scratch']
  %s0 = inlined_call_operand.hbm [shape: f32[18,128], index: 0, kind: input, shape index: {}]
  %s1 = inlined_call_operand.hbm [shape: f32[128,256], index: 1, kind: input, shape index: {}]
  %s2 = inlined_call_operand.vmem [shape: f32[1,256], index: 2, kind: input, shape index: {}]
  %s3 = inlined_call_operand.vmem [shape: f32[1,256], index: 3, kind: input, shape index: {}]
  %s4 = inlined_call_operand.vmem [shape: f32[1,256], index: 4, kind: input, shape index: {}]
  %s5 = inlined_call_operand.hbm [shape: f32[18,256], index: 5, kind: output, shape index: {}]
  %s6 = sld [smem:[#allocation0]]
  $region38: #{tpu_custom_call.1} parent=0
    _
  %s8 = ssub.s32 1, %s6
  %s9 = scalar_select 0, %s8, %s6
  $region1: #{tpu_custom_call.1} parent=0
    #allocation2 [shape = 'u8[12288]{0}', space=vmem, size = 0x3000, scoped, tag = 'input window, operand 0, single buffered']
    #allocation3 [shape = 's32[1]{0}', space=sflag, size = 0x4, scoped, tag = 'scoped memory for tpu_custom_call.1']
    #allocation4 [shape = 's32[1]{0}', space=sflag, size = 0x4, scoped, tag = 'scoped memory for tpu_custom_call.1']
    #allocation5 [shape = 'u8[131072]{0}', space=vmem, size = 0x20000, scoped, tag = 'input window, operand 1, single buffered']
    #allocation6 [shape = 's32[1]{0}', space=sflag, size = 0x4, scoped, tag = 'scoped memory for tpu_custom_call.1']
    #allocation7 [shape = 'u8[24576]{0}', space=vmem, size = 0x6000, scoped, tag = 'output window, operand 0, single buffered']
    %10 = vsyncpa [#allocation3], 0
    %11 = vsyncpa [#allocation6], 0
    %12 = vsyncpa [#allocation4], 0
    // Predicated region
    $region2: #{tpu_custom_call.1} parent=1 // pred_check
      _
    $region3: #{tpu_custom_call.1} parent=1 // pred_check_branch
      %14 = sbr.rel (0) target = $region5
    $region4: #{tpu_custom_call.1} parent=1 // pred_region
      %s16 = ssub.s32 384, 384
      %17 = vsyncadd [#allocation3], %s16
      %s18 = sshll.u32 [#allocation2], 4
      %s19 = int_to_ptr.vmem [resolvable:$true] %s18
      %24 = dma.hbm_to_vmem [thread:$0]  %s0, 384, %s19, [#allocation3], 128, 128, 8
    $region5: #{tpu_custom_call.1} parent=1 // pred_fallthru
      _
    // Predicated region
    $region6: #{tpu_custom_call.1} parent=1 // pred_check
      _
    $region7: #{tpu_custom_call.1} parent=1 // pred_check_branch
      %26 = sbr.rel (0) target = $region9
    $region8: #{tpu_custom_call.1} parent=1 // pred_region
      %s28 = ssub.s32 4096, 4096
      %29 = vsyncadd [#allocation6], %s28
      %s30 = sshll.u32 [#allocation5], 4
      %s31 = int_to_ptr.vmem [resolvable:$true] %s30
      %36 = dma.hbm_to_vmem [thread:$0]  %s1, 4096, %s31, [#allocation6], 256, 256, 16
    $region9: #{tpu_custom_call.1} parent=1 // pred_fallthru
      _
    // Predicated region
    $region10: #{tpu_custom_call.1} parent=1 // pred_check
      _
    $region11: #{tpu_custom_call.1} parent=1 // pred_check_branch
      %38 = sbr.rel (0) target = $region13
    $region12: #{tpu_custom_call.1} parent=1 // pred_region
      _
    $region13: #{tpu_custom_call.1} parent=1 // pred_fallthru
      _
    // Predicated region
    $region14: #{tpu_custom_call.1} parent=1 // pred_check
      _
    $region15: #{tpu_custom_call.1} parent=1 // pred_check_branch
      %40 = sbr.rel (0) target = $region17
    $region16: #{tpu_custom_call.1} parent=1 // pred_region
      _
    $region17: #{tpu_custom_call.1} parent=1 // pred_fallthru
      _
    // Predicated region
    $region18: #{tpu_custom_call.1} parent=1 // pred_check
      _
    $region19: #{tpu_custom_call.1} parent=1 // pred_check_branch
      %42 = sbr.rel (0) target = $region21
    $region20: #{tpu_custom_call.1} parent=1 // pred_region
      _
    $region21: #{tpu_custom_call.1} parent=1 // pred_fallthru
      _
    // Predicated region
    $region22: #{tpu_custom_call.1} parent=1 // pred_check
      _
    $region23: #{tpu_custom_call.1} parent=1 // pred_check_branch
      %44 = sbr.rel (0) target = $region25
    $region24: #{tpu_custom_call.1} parent=1 // pred_region
      %45 = dma.done [#allocation3], 384
    $region25: #{tpu_custom_call.1} parent=1 // pred_fallthru
      _
    // Predicated region
    $region26: #{tpu_custom_call.1} parent=1 // pred_check
      _
    $region27: #{tpu_custom_call.1} parent=1 // pred_check_branch
      %47 = sbr.rel (0) target = $region29
    $region28: #{tpu_custom_call.1} parent=1 // pred_region
      %48 = dma.done [#allocation6], 4096
    $region29: #{tpu_custom_call.1} parent=1 // pred_fallthru
      _
    %v49 = vld [vmem:[#allocation2] sm:$0xff]
    %v50 = vld [vmem:[#allocation2 + $0x8] sm:$0xff]
    %v51 = vld [vmem:[#allocation2 + $0x10] sm:$0xff]
    %v52 = vld [vmem:[#allocation5] sm:$0xff]
    %v53 = vld [vmem:[#allocation5 + $0x8] sm:$0xff]
    %v54 = vld [vmem:[#allocation5 + $0x10] sm:$0xff]
    %v55 = vld [vmem:[#allocation5 + $0x18] sm:$0xff]
    %v56 = vld [vmem:[#allocation5 + $0x20] sm:$0xff]
    %v57 = vld [vmem:[#allocation5 + $0x28] sm:$0xff]
    %v58 = vld [vmem:[#allocation5 + $0x30] sm:$0xff]
    %v59 = vld [vmem:[#allocation5 + $0x38] sm:$0xff]
    %v60 = vld [vmem:[#allocation5 + $0x40] sm:$0xff]
    %v61 = vld [vmem:[#allocation5 + $0x48] sm:$0xff]
    %v62 = vld [vmem:[#allocation5 + $0x50] sm:$0xff]
    %v63 = vld [vmem:[#allocation5 + $0x58] sm:$0xff]
    %v64 = vld [vmem:[#allocation5 + $0x60] sm:$0xff]
    %v65 = vld [vmem:[#allocation5 + $0x68] sm:$0xff]
    %v66 = vld [vmem:[#allocation5 + $0x70] sm:$0xff]
    %v67 = vld [vmem:[#allocation5 + $0x78] sm:$0xff]
    %v68 = vld [vmem:[#allocation5 + $0x80] sm:$0xff]
    %v69 = vld [vmem:[#allocation5 + $0x88] sm:$0xff]
    %v70 = vld [vmem:[#allocation5 + $0x90] sm:$0xff]
    %v71 = vld [vmem:[#allocation5 + $0x98] sm:$0xff]
    %v72 = vld [vmem:[#allocation5 + $0xa0] sm:$0xff]
    %v73 = vld [vmem:[#allocation5 + $0xa8] sm:$0xff]
    %v74 = vld [vmem:[#allocation5 + $0xb0] sm:$0xff]
    %v75 = vld [vmem:[#allocation5 + $0xb8] sm:$0xff]
    %v76 = vld [vmem:[#allocation5 + $0xc0] sm:$0xff]
    %v77 = vld [vmem:[#allocation5 + $0xc8] sm:$0xff]
    %v78 = vld [vmem:[#allocation5 + $0xd0] sm:$0xff]
    %v79 = vld [vmem:[#allocation5 + $0xd8] sm:$0xff]
    %v80 = vld [vmem:[#allocation5 + $0xe0] sm:$0xff]
    %v81 = vld [vmem:[#allocation5 + $0xe8] sm:$0xff]
    %v82 = vld [vmem:[#allocation5 + $0xf0] sm:$0xff]
    %v83 = vld [vmem:[#allocation5 + $0xf8] sm:$0xff]
    %v84 = vld [vmem:[%s2] sm:$0x3]
    %v86 = vlaneseq
    %v87 = vshrl.u32 %v86, 7
    %v88 = vsub.s32 0, %v87
    %v89 = vrot.slane %v84, %v88
    %v90 = vlaneseq
    %v91 = vshrl.u32 %v90, 7
    %v92 = vsub.s32 1, %v91
    %v93 = vrot.slane %v84, %v92
    %96 = vmatprep.subr.mxu0 %v83
    %97 = vmatpush1.msra.mxu0 %v82
    %98 = vmatprep.subr.mxu0 %v81
    %99 = vmatpush1.msra.mxu0 %v80
    %100 = vmatprep.subr.mxu0 %v79
    %101 = vmatpush1.msra.mxu0 %v78
    %102 = vmatprep.subr.mxu0 %v77
    %103 = vmatpush1.msra.mxu0 %v76
    %104 = vmatprep.subr.mxu0 %v75
    %105 = vmatpush1.msra.mxu0 %v74
    %106 = vmatprep.subr.mxu0 %v73
    %107 = vmatpush1.msra.mxu0 %v72
    %108 = vmatprep.subr.mxu0 %v71
    %109 = vmatpush1.msra.mxu0 %v70
    %110 = vmatprep.subr.mxu0 %v69
    %111 = vmatpush1.msra.mxu0 %v68
    %112 = vmatprep.subr.mxu0 %v67
    %113 = vmatpush1.msra.mxu0 %v66
    %114 = vmatprep.subr.mxu0 %v65
    %115 = vmatpush1.msra.mxu0 %v64
    %116 = vmatprep.subr.mxu0 %v63
    %117 = vmatpush1.msra.mxu0 %v62
    %118 = vmatprep.subr.mxu0 %v61
    %119 = vmatpush1.msra.mxu0 %v60
    %120 = vmatprep.subr.mxu0 %v59
    %121 = vmatpush1.msra.mxu0 %v58
    %122 = vmatprep.subr.mxu0 %v57
    %123 = vmatpush1.msra.mxu0 %v56
    %124 = vmatprep.subr.mxu0 %v55
    %125 = vmatpush1.msra.mxu0 %v54
    %126 = vmatprep.subr.mxu0 %v53
    %127 = vmatpush1.msra.mxu0 %v52
    %128 = vmatprep.subr.mxu0 0.0
    %129 = vmatpush2.msra.mxu0 0.0
    %130 = vmatprep.subr.mxu0 0.0
    %131 = vmatpush2.msra.mxu0 0.0
    %132 = vmatprep.subr.mxu0 0.0
    %133 = vmatpush2.msra.mxu0 0.0
    %134 = vmatprep.subr.mxu0 0.0
    %135 = vmatpush2.msra.mxu0 0.0
    %136 = vmatprep.subr.mxu0 0.0
    %137 = vmatpush2.msra.mxu0 0.0
    %138 = vmatprep.subr.mxu0 0.0
    %139 = vmatpush2.msra.mxu0 0.0
    %140 = vmatprep.subr.mxu0 0.0
    %141 = vmatpush2.msra.mxu0 0.0
    %142 = vmatprep.subr.mxu0 0.0
    %143 = vmatpush2.msra.mxu0 0.0
    %144 = vmatprep.subr.mxu0 0.0
    %145 = vmatpush2.msra.mxu0 0.0
    %146 = vmatprep.subr.mxu0 0.0
    %147 = vmatpush2.msra.mxu0 0.0
    %148 = vmatprep.subr.mxu0 0.0
    %149 = vmatpush2.msra.mxu0 0.0
    %150 = vmatprep.subr.mxu0 0.0
    %151 = vmatpush2.msra.mxu0 0.0
    %152 = vmatprep.subr.mxu0 0.0
    %153 = vmatpush2.msra.mxu0 0.0
    %154 = vmatprep.subr.mxu0 0.0
    %155 = vmatpush2.msra.mxu0 0.0
    %156 = vmatprep.subr.mxu0 0.0
    %157 = vmatpush2.msra.mxu0 0.0
    %158 = vmatprep.subr.mxu0 0.0
    %159 = vmatpush2.msra.mxu0 0.0
    %160 = vmatprep.mubr.f32.mxu0 0.0
    %161 = vmatmul.mubr.f32.gmra.mxu0 %v49
    %v162 = vpop.f32.mrf.mxu0
    %v163 = vadd.f32 %v89, %v162
    %v164 = vpop.f32.mrf.mxu0
    %v165 = vadd.f32 %v93, %v164
    %166 = vmatprep.mubr.f32.mxu0 0.0
    %167 = vmatmul.mubr.f32.gmra.mxu0 %v50
    %v168 = vpop.f32.mrf.mxu0
    %v169 = vadd.f32 %v89, %v168
    %v170 = vpop.f32.mrf.mxu0
    %v171 = vadd.f32 %v93, %v170
    %172 = vmatprep.mubr.f32.mxu0 0.0
    %173 = vmatmul.mubr.f32.gmra.mxu0 %v51
    %v174 = vpop.f32.mrf.mxu0
    %v175 = vadd.f32 %v89, %v174
    %v176 = vpop.f32.mrf.mxu0
    %v177 = vadd.f32 %v93, %v176
    %178 = vdwg.mxu0
    %v179 = vmul.f32 %v163, 0.5
    %v180 = vmul.f32 %v165, 0.5
    %v181 = vmul.f32 %v169, 0.5
    %v182 = vmul.f32 %v171, 0.5
    %v183 = vmul.f32 %v175, 0.5
    %v184 = vmul.f32 %v177, 0.5
    %v185 = vmul.f32 %v163, 0.70710677
    %v186 = vmul.f32 %v165, 0.70710677
    %v187 = vmul.f32 %v169, 0.70710677
    %v188 = vmul.f32 %v171, 0.70710677
    %v189 = vmul.f32 %v175, 0.70710677
    %v190 = vmul.f32 %v177, 0.70710677
    %v191 = verf.f32.pop %v185
    %v192 = verf.f32.pop %v186
    %v193 = verf.f32.pop %v187
    %v194 = verf.f32.pop %v188
    %v195 = verf.f32.pop %v189
    %v196 = verf.f32.pop %v190
    %v197 = vadd.f32 %v191, 1.0
    %v198 = vadd.f32 %v192, 1.0
    %v199 = vadd.f32 %v193, 1.0
    %v200 = vadd.f32 %v194, 1.0
    %v201 = vadd.f32 %v195, 1.0
    %v202 = vadd.f32 %v196, 1.0
    %v203 = vmul.f32 %v179, %v197
    %v204 = vmul.f32 %v180, %v198
    %v205 = vmul.f32 %v181, %v199
    %v206 = vmul.f32 %v182, %v200
    %v207 = vmul.f32 %v183, %v201
    %v208 = vmul.f32 %v184, %v202
    %v209 = vadd.f32 %v203, %v204
    %210 = vadd.xlane.f32.xlu0 %v209
    %v211 = vpop.xlane.xlu0 %210
    %v212 = vadd.f32 %v205, %v206
    %213 = vadd.xlane.f32.xlu0 %v212
    %v214 = vpop.xlane.xlu0 %213
    %v215 = vadd.f32 %v207, %v208
    %216 = vadd.xlane.f32.xlu0 %v215
    %v217 = vpop.xlane.xlu0 %216
    %v218 = vrcp.pop 256.0
    %v219 = vmul.f32 %v211, %v218
    %v220 = vmul.f32 %v214, %v218
    %v221 = vmul.f32 %v217, %v218
    %v222 = vmul.f32 %v203, %v203
    %v223 = vmul.f32 %v204, %v204
    %v224 = vmul.f32 %v205, %v205
    %v225 = vmul.f32 %v206, %v206
    %v226 = vmul.f32 %v207, %v207
    %v227 = vmul.f32 %v208, %v208
    %v228 = vadd.f32 %v222, %v223
    %229 = vadd.xlane.f32.xlu0 %v228
    %v230 = vpop.xlane.xlu0 %229
    %v231 = vadd.f32 %v224, %v225
    %232 = vadd.xlane.f32.xlu0 %v231
    %v233 = vpop.xlane.xlu0 %232
    %v234 = vadd.f32 %v226, %v227
    %235 = vadd.xlane.f32.xlu0 %v234
    %v236 = vpop.xlane.xlu0 %235
    %v237 = vmul.f32 %v230, %v218
    %v238 = vmul.f32 %v233, %v218
    %v239 = vmul.f32 %v236, %v218
    %v240 = vmul.f32 %v219, %v219
    %v241 = vmul.f32 %v220, %v220
    %v242 = vmul.f32 %v221, %v221
    %v243 = vsub.f32 %v237, %v240
    %v244 = vsub.f32 %v238, %v241
    %v245 = vsub.f32 %v239, %v242
    %v246 = vmax.f32 %v243, 0.0
    %v247 = vmax.f32 %v244, 0.0
    %v248 = vmax.f32 %v245, 0.0
    %v249 = vadd.f32 %v246, 1e-05
    %v250 = vadd.f32 %v247, 1e-05
    %v251 = vadd.f32 %v248, 1e-05
    %v252 = vrsqrt.pop %v249
    %v253 = vrsqrt.pop %v250
    %v254 = vrsqrt.pop %v251
    %v255 = vsub.f32 %v203, %v219
    %v256 = vsub.f32 %v204, %v219
    %v257 = vsub.f32 %v205, %v220
    %v258 = vsub.f32 %v206, %v220
    %v259 = vsub.f32 %v207, %v221
    %v260 = vsub.f32 %v208, %v221
    %v261 = vmul.f32 %v255, %v252
    %v262 = vmul.f32 %v256, %v252
    %v263 = vmul.f32 %v257, %v253
    %v264 = vmul.f32 %v258, %v253
    %v265 = vmul.f32 %v259, %v254
    %v266 = vmul.f32 %v260, %v254
    %v267 = vld [vmem:[%s3] sm:$0x3]
    %v269 = vlaneseq
    %v270 = vshrl.u32 %v269, 7
    %v271 = vsub.s32 0, %v270
    %v272 = vrot.slane %v267, %v271
    %v273 = vlaneseq
    %v274 = vshrl.u32 %v273, 7
    %v275 = vsub.s32 1, %v274
    %v276 = vrot.slane %v267, %v275
    %v279 = vmul.f32 %v261, %v272
    %v280 = vmul.f32 %v262, %v276
    %v281 = vmul.f32 %v263, %v272
    %v282 = vmul.f32 %v264, %v276
    %v283 = vmul.f32 %v265, %v272
    %v284 = vmul.f32 %v266, %v276
    %v285 = vld [vmem:[%s4] sm:$0x3]
    %v287 = vlaneseq
    %v288 = vshrl.u32 %v287, 7
    %v289 = vsub.s32 0, %v288
    %v290 = vrot.slane %v285, %v289
    %v291 = vlaneseq
    %v292 = vshrl.u32 %v291, 7
    %v293 = vsub.s32 1, %v292
    %v294 = vrot.slane %v285, %v293
    %v297 = vadd.f32 %v279, %v290
    %v298 = vadd.f32 %v280, %v294
    %v299 = vadd.f32 %v281, %v290
    %v300 = vadd.f32 %v282, %v294
    %v301 = vadd.f32 %v283, %v290
    %v302 = vadd.f32 %v284, %v294
    %303 = vst [vmem:[#allocation7] sm:$0xff] %v297
    %304 = vst [vmem:[#allocation7 + $0x8] sm:$0xff] %v298
    %305 = vst [vmem:[#allocation7 + $0x10] sm:$0xff] %v299
    %306 = vst [vmem:[#allocation7 + $0x18] sm:$0xff] %v300
    %307 = vst [vmem:[#allocation7 + $0x20] sm:$0xff] %v301
    %308 = vst [vmem:[#allocation7 + $0x28] sm:$0xff] %v302
    // Predicated region
    $region30: #{tpu_custom_call.1} parent=1 // pred_check
      _
    $region31: #{tpu_custom_call.1} parent=1 // pred_check_branch
      %310 = sbr.rel (0) target = $region33
    $region32: #{tpu_custom_call.1} parent=1 // pred_region
      %s312 = ssub.s32 768, 768
      %313 = vsyncadd [#allocation4], %s312
      %s314 = sshll.u32 [#allocation7], 4
      %s315 = int_to_ptr.vmem [resolvable:$true] %s314
      %320 = dma.vmem_to_hbm [thread:$0]  %s315, 768, %s5, [#allocation4], 256, 256, 16
    $region33: #{tpu_custom_call.1} parent=1 // pred_fallthru
      _
    // Predicated region
    $region34: #{tpu_custom_call.1} parent=1 // pred_check
      _
    $region35: #{tpu_custom_call.1} parent=1 // pred_check_branch
      %322 = sbr.rel (0) target = $region37
    $region36: #{tpu_custom_call.1} parent=1 // pred_region
      %323 = dma.done [#allocation4], 768
    $region37: #{tpu_custom_call.1} parent=1 // pred_fallthru
      _
    %324 = vsyncpa [#allocation3], 1
    %325 = vsyncpa [#allocation6], 1
    %326 = vsyncpa [#allocation4], 1

// kernel: tpu_custom_call.1
$region0: #{tpu_custom_call.1}
  #allocation0 [shape = 'u32[]', space=smem, size = 0x4, offset = 0x4, fixed_abs, tag = 'smem constant byte address 0x4 - core index']
  #allocation1 [shape = 'u32[144,128]{1,0:T(1,128)}', space=vmem, size = 0x12000, scoped, tag = 'internal scratch']
  %s0 = inlined_call_operand.hbm [shape: f32[18,128], index: 0, kind: input, shape index: {}]
  %s1 = inlined_call_operand.hbm [shape: f32[128,256], index: 1, kind: input, shape index: {}]
  %s2 = inlined_call_operand.vmem [shape: f32[1,256], index: 2, kind: input, shape index: {}]
  %s3 = inlined_call_operand.vmem [shape: f32[1,256], index: 3, kind: input, shape index: {}]
  %s4 = inlined_call_operand.vmem [shape: f32[1,256], index: 4, kind: input, shape index: {}]
  %s5 = inlined_call_operand.hbm [shape: f32[18,256], index: 5, kind: output, shape index: {}]
  %s6 = sld [smem:[#allocation0]]
  $region38: #{tpu_custom_call.1} parent=0
    _
  %s8 = ssub.s32 1, %s6
  %s9 = scalar_select 0, %s8, %s6
  $region1: #{tpu_custom_call.1} parent=0
    #allocation2 [shape = 'u8[12288]{0}', space=vmem, size = 0x3000, scoped, tag = 'input window, operand 0, single buffered']
    #allocation3 [shape = 's32[1]{0}', space=sflag, size = 0x4, scoped, tag = 'scoped memory for tpu_custom_call.1']
    #allocation4 [shape = 's32[1]{0}', space=sflag, size = 0x4, scoped, tag = 'scoped memory for tpu_custom_call.1']
    #allocation5 [shape = 'u8[131072]{0}', space=vmem, size = 0x20000, scoped, tag = 'input window, operand 1, single buffered']
    #allocation6 [shape = 's32[1]{0}', space=sflag, size = 0x4, scoped, tag = 'scoped memory for tpu_custom_call.1']
    #allocation7 [shape = 'u8[24576]{0}', space=vmem, size = 0x6000, scoped, tag = 'output window, operand 0, single buffered']
    %10 = vsyncpa [#allocation3], 0
    %11 = vsyncpa [#allocation6], 0
    %12 = vsyncpa [#allocation4], 0
    // Predicated region
    $region2: #{tpu_custom_call.1} parent=1 // pred_check
      _
    $region3: #{tpu_custom_call.1} parent=1 // pred_check_branch
      %14 = sbr.rel (0) target = $region5
    $region4: #{tpu_custom_call.1} parent=1 // pred_region
      %s16 = ssub.s32 384, 384
      %17 = vsyncadd [#allocation3], %s16
      %s18 = sshll.u32 [#allocation2], 4
      %s19 = int_to_ptr.vmem [resolvable:$true] %s18
      %24 = dma.hbm_to_vmem [thread:$0]  %s0, 384, %s19, [#allocation3], 128, 128, 8
    $region5: #{tpu_custom_call.1} parent=1 // pred_fallthru
      _
    // Predicated region
    $region6: #{tpu_custom_call.1} parent=1 // pred_check
      _
    $region7: #{tpu_custom_call.1} parent=1 // pred_check_branch
      %26 = sbr.rel (0) target = $region9
    $region8: #{tpu_custom_call.1} parent=1 // pred_region
      %s28 = ssub.s32 4096, 4096
      %29 = vsyncadd [#allocation6], %s28
      %s30 = sshll.u32 [#allocation5], 4
      %s31 = int_to_ptr.vmem [resolvable:$true] %s30
      %36 = dma.hbm_to_vmem [thread:$0]  %s1, 4096, %s31, [#allocation6], 256, 256, 16
    $region9: #{tpu_custom_call.1} parent=1 // pred_fallthru
      _
    // Predicated region
    $region10: #{tpu_custom_call.1} parent=1 // pred_check
      _
    $region11: #{tpu_custom_call.1} parent=1 // pred_check_branch
      %38 = sbr.rel (0) target = $region13
    $region12: #{tpu_custom_call.1} parent=1 // pred_region
      _
    $region13: #{tpu_custom_call.1} parent=1 // pred_fallthru
      _
    // Predicated region
    $region14: #{tpu_custom_call.1} parent=1 // pred_check
      _
    $region15: #{tpu_custom_call.1} parent=1 // pred_check_branch
      %40 = sbr.rel (0) target = $region17
    $region16: #{tpu_custom_call.1} parent=1 // pred_region
      _
    $region17: #{tpu_custom_call.1} parent=1 // pred_fallthru
      _
    // Predicated region
    $region18: #{tpu_custom_call.1} parent=1 // pred_check
      _
    $region19: #{tpu_custom_call.1} parent=1 // pred_check_branch
      %42 = sbr.rel (0) target = $region21
    $region20: #{tpu_custom_call.1} parent=1 // pred_region
      _
    $region21: #{tpu_custom_call.1} parent=1 // pred_fallthru
      _
    // Predicated region
    $region22: #{tpu_custom_call.1} parent=1 // pred_check
      _
    $region23: #{tpu_custom_call.1} parent=1 // pred_check_branch
      %44 = sbr.rel (0) target = $region25
    $region24: #{tpu_custom_call.1} parent=1 // pred_region
      %45 = dma.done [#allocation3], 384
    $region25: #{tpu_custom_call.1} parent=1 // pred_fallthru
      _
    // Predicated region
    $region26: #{tpu_custom_call.1} parent=1 // pred_check
      _
    $region27: #{tpu_custom_call.1} parent=1 // pred_check_branch
      %47 = sbr.rel (0) target = $region29
    $region28: #{tpu_custom_call.1} parent=1 // pred_region
      %48 = dma.done [#allocation6], 4096
    $region29: #{tpu_custom_call.1} parent=1 // pred_fallthru
      _
    %v49 = vld [vmem:[#allocation2] sm:$0xff]
    %v50 = vld [vmem:[#allocation2 + $0x8] sm:$0xff]
    %v51 = vld [vmem:[#allocation2 + $0x10] sm:$0xff]
    %v52 = vld [vmem:[#allocation5] sm:$0xff]
    %v53 = vld [vmem:[#allocation5 + $0x8] sm:$0xff]
    %v54 = vld [vmem:[#allocation5 + $0x10] sm:$0xff]
    %v55 = vld [vmem:[#allocation5 + $0x18] sm:$0xff]
    %v56 = vld [vmem:[#allocation5 + $0x20] sm:$0xff]
    %v57 = vld [vmem:[#allocation5 + $0x28] sm:$0xff]
    %v58 = vld [vmem:[#allocation5 + $0x30] sm:$0xff]
    %v59 = vld [vmem:[#allocation5 + $0x38] sm:$0xff]
    %v60 = vld [vmem:[#allocation5 + $0x40] sm:$0xff]
    %v61 = vld [vmem:[#allocation5 + $0x48] sm:$0xff]
    %v62 = vld [vmem:[#allocation5 + $0x50] sm:$0xff]
    %v63 = vld [vmem:[#allocation5 + $0x58] sm:$0xff]
    %v64 = vld [vmem:[#allocation5 + $0x60] sm:$0xff]
    %v65 = vld [vmem:[#allocation5 + $0x68] sm:$0xff]
    %v66 = vld [vmem:[#allocation5 + $0x70] sm:$0xff]
    %v67 = vld [vmem:[#allocation5 + $0x78] sm:$0xff]
    %v68 = vld [vmem:[#allocation5 + $0x80] sm:$0xff]
    %v69 = vld [vmem:[#allocation5 + $0x88] sm:$0xff]
    %v70 = vld [vmem:[#allocation5 + $0x90] sm:$0xff]
    %v71 = vld [vmem:[#allocation5 + $0x98] sm:$0xff]
    %v72 = vld [vmem:[#allocation5 + $0xa0] sm:$0xff]
    %v73 = vld [vmem:[#allocation5 + $0xa8] sm:$0xff]
    %v74 = vld [vmem:[#allocation5 + $0xb0] sm:$0xff]
    %v75 = vld [vmem:[#allocation5 + $0xb8] sm:$0xff]
    %v76 = vld [vmem:[#allocation5 + $0xc0] sm:$0xff]
    %v77 = vld [vmem:[#allocation5 + $0xc8] sm:$0xff]
    %v78 = vld [vmem:[#allocation5 + $0xd0] sm:$0xff]
    %v79 = vld [vmem:[#allocation5 + $0xd8] sm:$0xff]
    %v80 = vld [vmem:[#allocation5 + $0xe0] sm:$0xff]
    %v81 = vld [vmem:[#allocation5 + $0xe8] sm:$0xff]
    %v82 = vld [vmem:[#allocation5 + $0xf0] sm:$0xff]
    %v83 = vld [vmem:[#allocation5 + $0xf8] sm:$0xff]
    %v84 = vld [vmem:[%s2] sm:$0x3]
    %v86 = vlaneseq
    %v87 = vshrl.u32 %v86, 7
    %v88 = vsub.s32 0, %v87
    %v89 = vrot.slane %v84, %v88
    %v90 = vlaneseq
    %v91 = vshrl.u32 %v90, 7
    %v92 = vsub.s32 1, %v91
    %v93 = vrot.slane %v84, %v92
    %96 = vmatprep.subr.mxu0 %v83
    %97 = vmatpush1.msra.mxu0 %v82
    %98 = vmatprep.subr.mxu0 %v81
    %99 = vmatpush1.msra.mxu0 %v80
    %100 = vmatprep.subr.mxu0 %v79
    %101 = vmatpush1.msra.mxu0 %v78
    %102 = vmatprep.subr.mxu0 %v77
    %103 = vmatpush1.msra.mxu0 %v76
    %104 = vmatprep.subr.mxu0 %v75
    %105 = vmatpush1.msra.mxu0 %v74
    %106 = vmatprep.subr.mxu0 %v73
    %107 = vmatpush1.msra.mxu0 %v72
    %108 = vmatprep.subr.mxu0 %v71
    %109 = vmatpush1.msra.mxu0 %v70
    %110 = vmatprep.subr.mxu0 %v69
    %111 = vmatpush1.msra.mxu0 %v68
    %112 = vmatprep.subr.mxu0 %v67
    %113 = vmatpush1.msra.mxu0 %v66
    %114 = vmatprep.subr.mxu0 %v65
    %115 = vmatpush1.msra.mxu0 %v64
    %116 = vmatprep.subr.mxu0 %v63
    %117 = vmatpush1.msra.mxu0 %v62
    %118 = vmatprep.subr.mxu0 %v61
    %119 = vmatpush1.msra.mxu0 %v60
    %120 = vmatprep.subr.mxu0 %v59
    %121 = vmatpush1.msra.mxu0 %v58
    %122 = vmatprep.subr.mxu0 %v57
    %123 = vmatpush1.msra.mxu0 %v56
    %124 = vmatprep.subr.mxu0 %v55
    %125 = vmatpush1.msra.mxu0 %v54
    %126 = vmatprep.subr.mxu0 %v53
    %127 = vmatpush1.msra.mxu0 %v52
    %128 = vmatprep.subr.mxu0 0.0
    %129 = vmatpush2.msra.mxu0 0.0
    %130 = vmatprep.subr.mxu0 0.0
    %131 = vmatpush2.msra.mxu0 0.0
    %132 = vmatprep.subr.mxu0 0.0
    %133 = vmatpush2.msra.mxu0 0.0
    %134 = vmatprep.subr.mxu0 0.0
    %135 = vmatpush2.msra.mxu0 0.0
    %136 = vmatprep.subr.mxu0 0.0
    %137 = vmatpush2.msra.mxu0 0.0
    %138 = vmatprep.subr.mxu0 0.0
    %139 = vmatpush2.msra.mxu0 0.0
    %140 = vmatprep.subr.mxu0 0.0
    %141 = vmatpush2.msra.mxu0 0.0
    %142 = vmatprep.subr.mxu0 0.0
    %143 = vmatpush2.msra.mxu0 0.0
    %144 = vmatprep.subr.mxu0 0.0
    %145 = vmatpush2.msra.mxu0 0.0
    %146 = vmatprep.subr.mxu0 0.0
    %147 = vmatpush2.msra.mxu0 0.0
    %148 = vmatprep.subr.mxu0 0.0
    %149 = vmatpush2.msra.mxu0 0.0
    %150 = vmatprep.subr.mxu0 0.0
    %151 = vmatpush2.msra.mxu0 0.0
    %152 = vmatprep.subr.mxu0 0.0
    %153 = vmatpush2.msra.mxu0 0.0
    %154 = vmatprep.subr.mxu0 0.0
    %155 = vmatpush2.msra.mxu0 0.0
    %156 = vmatprep.subr.mxu0 0.0
    %157 = vmatpush2.msra.mxu0 0.0
    %158 = vmatprep.subr.mxu0 0.0
    %159 = vmatpush2.msra.mxu0 0.0
    %160 = vmatprep.mubr.f32.mxu0 0.0
    %161 = vmatmul.mubr.f32.gmra.mxu0 %v49
    %v162 = vpop.f32.mrf.mxu0
    %v163 = vadd.f32 %v89, %v162
    %v164 = vpop.f32.mrf.mxu0
    %v165 = vadd.f32 %v93, %v164
    %166 = vmatprep.mubr.f32.mxu0 0.0
    %167 = vmatmul.mubr.f32.gmra.mxu0 %v50
    %v168 = vpop.f32.mrf.mxu0
    %v169 = vadd.f32 %v89, %v168
    %v170 = vpop.f32.mrf.mxu0
    %v171 = vadd.f32 %v93, %v170
    %172 = vmatprep.mubr.f32.mxu0 0.0
    %173 = vmatmul.mubr.f32.gmra.mxu0 %v51
    %v174 = vpop.f32.mrf.mxu0
    %v175 = vadd.f32 %v89, %v174
    %v176 = vpop.f32.mrf.mxu0
    %v177 = vadd.f32 %v93, %v176
    %178 = vdwg.mxu0
    %v179 = vmul.f32 %v163, 0.5
    %v180 = vmul.f32 %v165, 0.5
    %v181 = vmul.f32 %v169, 0.5
    %v182 = vmul.f32 %v171, 0.5
    %v183 = vmul.f32 %v175, 0.5
    %v184 = vmul.f32 %v177, 0.5
    %v185 = vmul.f32 %v163, 0.70710677
    %v186 = vmul.f32 %v165, 0.70710677
    %v187 = vmul.f32 %v169, 0.70710677
    %v188 = vmul.f32 %v171, 0.70710677
    %v189 = vmul.f32 %v175, 0.70710677
    %v190 = vmul.f32 %v177, 0.70710677
    %v191 = verf.f32.pop %v185
    %v192 = verf.f32.pop %v186
    %v193 = verf.f32.pop %v187
    %v194 = verf.f32.pop %v188
    %v195 = verf.f32.pop %v189
    %v196 = verf.f32.pop %v190
    %v197 = vadd.f32 %v191, 1.0
    %v198 = vadd.f32 %v192, 1.0
    %v199 = vadd.f32 %v193, 1.0
    %v200 = vadd.f32 %v194, 1.0
    %v201 = vadd.f32 %v195, 1.0
    %v202 = vadd.f32 %v196, 1.0
    %v203 = vmul.f32 %v179, %v197
    %v204 = vmul.f32 %v180, %v198
    %v205 = vmul.f32 %v181, %v199
    %v206 = vmul.f32 %v182, %v200
    %v207 = vmul.f32 %v183, %v201
    %v208 = vmul.f32 %v184, %v202
    %v209 = vadd.f32 %v203, %v204
    %210 = vadd.xlane.f32.xlu0 %v209
    %v211 = vpop.xlane.xlu0 %210
    %v212 = vadd.f32 %v205, %v206
    %213 = vadd.xlane.f32.xlu0 %v212
    %v214 = vpop.xlane.xlu0 %213
    %v215 = vadd.f32 %v207, %v208
    %216 = vadd.xlane.f32.xlu0 %v215
    %v217 = vpop.xlane.xlu0 %216
    %v218 = vrcp.pop 256.0
    %v219 = vmul.f32 %v211, %v218
    %v220 = vmul.f32 %v214, %v218
    %v221 = vmul.f32 %v217, %v218
    %v222 = vmul.f32 %v203, %v203
    %v223 = vmul.f32 %v204, %v204
    %v224 = vmul.f32 %v205, %v205
    %v225 = vmul.f32 %v206, %v206
    %v226 = vmul.f32 %v207, %v207
    %v227 = vmul.f32 %v208, %v208
    %v228 = vadd.f32 %v222, %v223
    %229 = vadd.xlane.f32.xlu0 %v228
    %v230 = vpop.xlane.xlu0 %229
    %v231 = vadd.f32 %v224, %v225
    %232 = vadd.xlane.f32.xlu0 %v231
    %v233 = vpop.xlane.xlu0 %232
    %v234 = vadd.f32 %v226, %v227
    %235 = vadd.xlane.f32.xlu0 %v234
    %v236 = vpop.xlane.xlu0 %235
    %v237 = vmul.f32 %v230, %v218
    %v238 = vmul.f32 %v233, %v218
    %v239 = vmul.f32 %v236, %v218
    %v240 = vmul.f32 %v219, %v219
    %v241 = vmul.f32 %v220, %v220
    %v242 = vmul.f32 %v221, %v221
    %v243 = vsub.f32 %v237, %v240
    %v244 = vsub.f32 %v238, %v241
    %v245 = vsub.f32 %v239, %v242
    %v246 = vmax.f32 %v243, 0.0
    %v247 = vmax.f32 %v244, 0.0
    %v248 = vmax.f32 %v245, 0.0
    %v249 = vadd.f32 %v246, 1e-05
    %v250 = vadd.f32 %v247, 1e-05
    %v251 = vadd.f32 %v248, 1e-05
    %v252 = vrsqrt.pop %v249
    %v253 = vrsqrt.pop %v250
    %v254 = vrsqrt.pop %v251
    %v255 = vsub.f32 %v203, %v219
    %v256 = vsub.f32 %v204, %v219
    %v257 = vsub.f32 %v205, %v220
    %v258 = vsub.f32 %v206, %v220
    %v259 = vsub.f32 %v207, %v221
    %v260 = vsub.f32 %v208, %v221
    %v261 = vmul.f32 %v255, %v252
    %v262 = vmul.f32 %v256, %v252
    %v263 = vmul.f32 %v257, %v253
    %v264 = vmul.f32 %v258, %v253
    %v265 = vmul.f32 %v259, %v254
    %v266 = vmul.f32 %v260, %v254
    %v267 = vld [vmem:[%s3] sm:$0x3]
    %v269 = vlaneseq
    %v270 = vshrl.u32 %v269, 7
    %v271 = vsub.s32 0, %v270
    %v272 = vrot.slane %v267, %v271
    %v273 = vlaneseq
    %v274 = vshrl.u32 %v273, 7
    %v275 = vsub.s32 1, %v274
    %v276 = vrot.slane %v267, %v275
    %v279 = vmul.f32 %v261, %v272
    %v280 = vmul.f32 %v262, %v276
    %v281 = vmul.f32 %v263, %v272
    %v282 = vmul.f32 %v264, %v276
    %v283 = vmul.f32 %v265, %v272
    %v284 = vmul.f32 %v266, %v276
    %v285 = vld [vmem:[%s4] sm:$0x3]
    %v287 = vlaneseq
    %v288 = vshrl.u32 %v287, 7
    %v289 = vsub.s32 0, %v288
    %v290 = vrot.slane %v285, %v289
    %v291 = vlaneseq
    %v292 = vshrl.u32 %v291, 7
    %v293 = vsub.s32 1, %v292
    %v294 = vrot.slane %v285, %v293
    %v297 = vadd.f32 %v279, %v290
    %v298 = vadd.f32 %v280, %v294
    %v299 = vadd.f32 %v281, %v290
    %v300 = vadd.f32 %v282, %v294
    %v301 = vadd.f32 %v283, %v290
    %v302 = vadd.f32 %v284, %v294
    %303 = vst [vmem:[#allocation7] sm:$0xff] %v297
    %304 = vst [vmem:[#allocation7 + $0x8] sm:$0xff] %v298
    %305 = vst [vmem:[#allocation7 + $0x10] sm:$0xff] %v299
    %306 = vst [vmem:[#allocation7 + $0x18] sm:$0xff] %v300
    %307 = vst [vmem:[#allocation7 + $0x20] sm:$0xff] %v301
    %308 = vst [vmem:[#allocation7 + $0x28] sm:$0xff] %v302
    // Predicated region
    $region30: #{tpu_custom_call.1} parent=1 // pred_check
      _
    $region31: #{tpu_custom_call.1} parent=1 // pred_check_branch
      %310 = sbr.rel (0) target = $region33
    $region32: #{tpu_custom_call.1} parent=1 // pred_region
      %s312 = ssub.s32 768, 768
      %313 = vsyncadd [#allocation4], %s312
      %s314 = sshll.u32 [#allocation7], 4
      %s315 = int_to_ptr.vmem [resolvable:$true] %s314
      %320 = dma.vmem_to_hbm [thread:$0]  %s315, 768, %s5, [#allocation4], 256, 256, 16
    $region33: #{tpu_custom_call.1} parent=1 // pred_fallthru
      _
    // Predicated region
    $region34: #{tpu_custom_call.1} parent=1 // pred_check
      _
    $region35: #{tpu_custom_call.1} parent=1 // pred_check_branch
      %322 = sbr.rel (0) target = $region37
    $region36: #{tpu_custom_call.1} parent=1 // pred_region
      %323 = dma.done [#allocation4], 768
    $region37: #{tpu_custom_call.1} parent=1 // pred_fallthru
      _
    %324 = vsyncpa [#allocation3], 1
    %325 = vsyncpa [#allocation6], 1
    %326 = vsyncpa [#allocation4], 1

</llo_original>
